<compile_context>
chip_gen: v6e
topology: v6e:2x2x1
jax: 0.10.0
libtpu: 0.0.40
codegen_flags: <defaults>
</compile_context>

<pallas_src>
import jax
import jax.numpy as jnp
from jax.experimental import pallas as pl
from jax.experimental.pallas import tpu as pltpu

FEAT = 64            # embedding feature size (Linear(64, 32))
HID = 32             # hidden width of mlp_scalar
PACK = 2 * FEAT      # two consecutive rows packed into one 128-lane row
DEFAULT_TM = 16384   # original (N, 64) rows processed per grid step


def _round_up(a, b):
    return ((a + b - 1) // b) * b


def _scaling_body(x_ref, w1b_ref, b1b_ref, v_ref, out_ref, scal_ref):
    """One lane-dense row tile of the scaling branch.

    x_ref    : (TM2, 128) packed embeddings (native dtype); lanes 0:64 = row 2r,
               lanes 64:128 = row 2r+1.
    w1b_ref  : (128, 64)  block-diag([W1^T, W1^T]) first Linear weight (f32).
    b1b_ref  : (1, 64)    [b1, b1].
    v_ref    : (64, 128)  second Linear weight with tao folded and broadcast:
               columns 0:64 all equal [w2/tao, 0_32], columns 64:128 all equal
               [0_32, w2/tao], so h @ v yields the per-row scalar w broadcast
               over each packed row's 64 lanes in one MXU matmul.
    out_ref  : (TM2, 128) gated embeddings, same packing / dtype as x_ref.
    scal_ref : (TM2, 2)   raw scalars w (f32), or None when not requested.
    """
    x = x_ref[...].astype(jnp.float32)                                   # (TM2, 128)

    # First Linear + Tanh on both packed halves at once (block-diagonal W1).
    h = jnp.dot(x, w1b_ref[...], preferred_element_type=jnp.float32)     # (TM2, 64)
    h = jnp.tanh(h + b1b_ref[...])

    # Second Linear + lane broadcast in a single MXU matmul (MXU has large
    # slack here); replaces the former masked XLU reductions / select chain.
    w_b = jnp.dot(h, v_ref[...], preferred_element_type=jnp.float32)     # (TM2, 128)
    w_even = w_b[:, 0:1]                    # scalar w of row 2r
    w_odd = w_b[:, FEAT:FEAT + 1]           # scalar w of row 2r+1

    # Sigmoid on 2 lanes/row instead of 128 keeps the EUP well under the HBM
    # time per tile (matters most on v7x and with bf16 streaming).
    sig_even = jax.nn.sigmoid(w_even)
    sig_odd = jax.nn.sigmoid(w_odd)
    lane = jax.lax.broadcasted_iota(jnp.int32, x.shape, 1)
    gate = jnp.where(lane < FEAT, sig_even, sig_odd)                     # (TM2, 128)

    out_ref[...] = (x * gate).astype(out_ref.dtype)
    if scal_ref is not None:
        scal_ref[...] = jnp.concatenate([w_even, w_odd], axis=-1).astype(
            scal_ref.dtype)


def _kernel_gate_only(x_ref, w1b_ref, b1b_ref, v_ref, out_ref):
    _scaling_body(x_ref, w1b_ref, b1b_ref, v_ref, out_ref, None)


def _kernel_gate_and_scalars(x_ref, w1b_ref, b1b_ref, v_ref, out_ref, scal_ref):
    _scaling_body(x_ref, w1b_ref, b1b_ref, v_ref, out_ref, scal_ref)


def mlp_scaling_forward(embs, w1, b1, w2, *, tao=11.0, use_tao=True,
                        return_scalars=False, tm=DEFAULT_TM):
    """Pallas forward of the 2-layer "scaling" branch of MLP.

    embs: (..., 64) float32 or bfloat16 (streamed in its native dtype).
    w1: (32, 64), b1: (32,), w2: (1, 32)  -- PyTorch Linear layout.
    Returns gated embs (same dtype as embs); if return_scalars=True also
    returns the raw scalar w with shape (..., 1) in float32.
    """
    assert embs.shape[-1] == FEAT
    orig_shape = embs.shape
    dtype = embs.dtype
    itemsize = jnp.dtype(dtype).itemsize

    x = embs.reshape(-1, FEAT)          # contiguous reshape: no data movement
    n_rows = x.shape[0]

    # Two consecutive 64-wide rows pack into one 128-wide lane row; pad a
    # single zero row only when the row count is odd.
    if n_rows % 2:
        x = jnp.pad(x, ((0, 1), (0, 0)))
    n2 = x.shape[0] // 2
    x2 = x.reshape(n2, PACK)            # contiguous reshape: no data movement

    # Row tile (in packed rows): multiple of the sublane quantum for the
    # streamed dtype, large enough to amortize per-grid-step overhead.
    sub = {4: 8, 2: 16, 1: 32}.get(itemsize, 8)
    tm2_cfg = max(sub, (max(int(tm), 2) // 2 // sub) * sub)
    if n2 <= tm2_cfg:
        # Single-tile case: shrink the tile to the input and pad the few
        # missing packed rows so the block exactly covers the array.
        tm2 = max(sub, _round_up(n2, sub))
        if tm2 != n2:
            x2 = jnp.pad(x2, ((0, tm2 - n2), (0, 0)))
            n2 = tm2
    else:
        # Multi-tile case: no full-array pad/slice copies -- the ragged
        # trailing block is handled by Pallas partial-block masking (the
        # garbage rows are never written back).
        tm2 = tm2_cfg
    grid_len = pl.cdiv(n2, tm2)

    # ---- parameter prep (plain JAX, outside the hot loop) ----
    w1t = jnp.asarray(w1, jnp.float32).T                                 # (64, 32)
    w1b = jnp.zeros((PACK, 2 * HID), jnp.float32)
    w1b = w1b.at[:FEAT, :HID].set(w1t).at[FEAT:, HID:].set(w1t)          # block-diag
    b1b = jnp.tile(jnp.asarray(b1, jnp.float32).reshape(1, HID), (1, 2))  # (1, 64)
    inv_tao = (1.0 / float(tao)) if use_tao else 1.0
    v2 = jnp.asarray(w2, jnp.float32).reshape(HID) * inv_tao             # (32,)
    col_even = jnp.concatenate([v2, jnp.zeros((HID,), jnp.float32)])     # (64,)
    col_odd = jnp.concatenate([jnp.zeros((HID,), jnp.float32), v2])      # (64,)
    vmat = jnp.concatenate(
        [jnp.tile(col_even[:, None], (1, FEAT)),
         jnp.tile(col_odd[:, None], (1, FEAT))], axis=1)                 # (64, 128)

    in_specs = [
        pl.BlockSpec((tm2, PACK), lambda i: (i, 0)),        # streamed embeddings
        pl.BlockSpec((PACK, 2 * HID), lambda i: (0, 0)),    # W1 block-diag
        pl.BlockSpec((1, 2 * HID), lambda i: (0, 0)),       # [b1, b1]
        pl.BlockSpec((2 * HID, PACK), lambda i: (0, 0)),    # broadcast W2/tao
    ]
    out_block = pl.BlockSpec((tm2, PACK), lambda i: (i, 0))

    # Explicit VMEM limit so the larger double-buffered tiles fit on every
    # generation (v5e's scoped default is 16 MiB); capped under v7x's 64 MiB.
    live = 2 * (2 * tm2 * PACK * itemsize
                + (tm2 * 2 * 4 if return_scalars else 0)) + (1 << 20)
    vmem_limit = int(min(48 * 1024 * 1024, max(16 * 1024 * 1024, 2 * live)))
    # NOTE(v7x): with dimension_semantics=("parallel",) an odd grid length
    # gives one TensorCore at most one extra tile; negligible at default tm.
    compiler_params = pltpu.CompilerParams(
        dimension_semantics=("parallel",),
        vmem_limit_bytes=vmem_limit)

    if return_scalars:
        out_shape = (jax.ShapeDtypeStruct((n2, PACK), dtype),
                     jax.ShapeDtypeStruct((n2, 2), jnp.float32))
        out_specs = (out_block, pl.BlockSpec((tm2, 2), lambda i: (i, 0)))
        kernel = _kernel_gate_and_scalars
    else:
        out_shape = jax.ShapeDtypeStruct((n2, PACK), dtype)
        out_specs = out_block
        kernel = _kernel_gate_only

    result = pl.pallas_call(
        kernel,
        out_shape=out_shape,
        grid_spec=pltpu.PrefetchScalarGridSpec(
            num_scalar_prefetch=0,
            grid=(grid_len,),
            in_specs=in_specs,
            out_specs=out_specs),
        compiler_params=compiler_params,
    )(x2, w1b, b1b, vmat)

    if return_scalars:
        out2, scal2 = result
    else:
        out2 = result

    rows = 2 * n2
    out = out2.reshape(rows, FEAT)
    if rows != n_rows:
        out = out[:n_rows]
    out = out.reshape(orig_shape)
    if not return_scalars:
        return out

    scal = scal2.reshape(rows, 1)
    if rows != n_rows:
        scal = scal[:n_rows]
    scal = scal.reshape(orig_shape[:-1] + (1,))
    return out, scal


def _reference(embs, w1, b1, w2, tao=11.0, use_tao=True):
    """Pure-JAX reference mirroring the PyTorch forward (f32 compute)."""
    x = embs.astype(jnp.float32)
    w = jnp.tanh(x @ w1.T + b1) @ w2.T
    if use_tao:
        w = w / tao
    return (x * jax.nn.sigmoid(w)).astype(embs.dtype), w


if __name__ == "__main__":
    key = jax.random.PRNGKey(0)
    k_w1, k_b1, k_w2, k_x1, k_x2, k_x3 = jax.random.split(key, 6)

    # Deterministic synthetic parameters (PyTorch Linear layout: (out, in)).
    w1 = jax.random.normal(k_w1, (HID, FEAT), dtype=jnp.float32) * 0.1
    b1 = jax.random.normal(k_b1, (HID,), dtype=jnp.float32) * 0.1
    w2 = jax.random.normal(k_w2, (1, HID), dtype=jnp.float32) * 0.1

    # Case 1: small [batch, seq, 64] f32, single exact tile, both return modes.
    embs = jax.random.normal(k_x1, (2, 8, FEAT), dtype=jnp.float32)
    out, scal = mlp_scaling_forward(embs, w1, b1, w2, tao=11.0, use_tao=True,
                                    return_scalars=True)
    out = jax.block_until_ready(out)
    scal = jax.block_until_ready(scal)
    ref_out, ref_w = _reference(embs, w1, b1, w2)
    assert out.shape == embs.shape and scal.shape == embs.shape[:-1] + (1,)
    assert jnp.allclose(out, ref_out, atol=1e-5, rtol=1e-5)
    assert jnp.allclose(scal, ref_w, atol=1e-5, rtol=1e-5)

    out_only = jax.block_until_ready(
        mlp_scaling_forward(embs, w1, b1, w2, tao=11.0, use_tao=True))
    assert jnp.allclose(out_only, ref_out, atol=1e-5, rtol=1e-5)

    # Case 2: ragged/odd row count (5*13 = 65 rows) with a tiny tile, forcing
    # a multi-tile grid with a partial trailing block (no full-array pad).
    embs_b = jax.random.normal(k_x2, (5, 13, FEAT), dtype=jnp.float32)
    out_b, scal_b = mlp_scaling_forward(embs_b, w1, b1, w2, tao=11.0,
                                        use_tao=True, return_scalars=True,
                                        tm=32)
    out_b = jax.block_until_ready(out_b)
    scal_b = jax.block_until_ready(scal_b)
    ref_out_b, ref_w_b = _reference(embs_b, w1, b1, w2)
    assert jnp.allclose(out_b, ref_out_b, atol=1e-5, rtol=1e-5)
    assert jnp.allclose(scal_b, ref_w_b, atol=1e-5, rtol=1e-5)

    # Case 3: bf16 streaming (native-dtype I/O, f32 compute in-kernel).
    embs_c = jax.random.normal(k_x3, (4, 16, FEAT),
                               dtype=jnp.float32).astype(jnp.bfloat16)
    out_c, scal_c = mlp_scaling_forward(embs_c, w1, b1, w2, tao=11.0,
                                        use_tao=True, return_scalars=True)
    out_c = jax.block_until_ready(out_c)
    scal_c = jax.block_until_ready(scal_c)
    ref_out_c, ref_w_c = _reference(embs_c, w1, b1, w2)
    assert out_c.dtype == jnp.bfloat16
    assert jnp.allclose(out_c.astype(jnp.float32), ref_out_c.astype(jnp.float32),
                        atol=3e-2, rtol=3e-2)
    assert jnp.allclose(scal_c, ref_w_c, atol=1e-4, rtol=1e-4)

    print("KERNEL_OK")
</pallas_src>

<mosaic_0001>
module attributes {stable_mosaic.version = 11 : i64} {
  func.func @_kernel_gate_and_scalars(%arg0: i32, %arg1: memref<8x128xf32, #tpu.memory_space<vmem>>, %arg2: memref<128x64xf32, #tpu.memory_space<vmem>>, %arg3: memref<1x64xf32, #tpu.memory_space<vmem>>, %arg4: memref<64x128xf32, #tpu.memory_space<vmem>>, %arg5: memref<8x128xf32, #tpu.memory_space<vmem>>, %arg6: memref<8x2xf32, #tpu.memory_space<vmem>>) attributes {dimension_semantics = [#tpu.dimension_semantics<parallel>], iteration_bounds = array<i64: 1>, scalar_prefetch = 0 : i64, scratch_operands = 0 : i64, tpu.core_type = #tpu.core_type<tc>, window_params = [{transform_indices = @transform_0, window_bounds = array<i64: 8, 128>}, {pipeline_mode = #tpu.pipeline_mode<synchronous>, transform_indices = @transform_1, window_bounds = array<i64: 128, 64>}, {pipeline_mode = #tpu.pipeline_mode<synchronous>, transform_indices = @transform_2, window_bounds = array<i64: 1, 64>}, {pipeline_mode = #tpu.pipeline_mode<synchronous>, transform_indices = @transform_3, window_bounds = array<i64: 64, 128>}, {transform_indices = @transform_4, window_bounds = array<i64: 8, 128>}, {transform_indices = @transform_5, window_bounds = array<i64: 8, 2>}]} {
    %c0 = arith.constant 0 : index
    %c0_0 = arith.constant 0 : index
    %0 = vector.load %arg1[%c0, %c0_0] : memref<8x128xf32, #tpu.memory_space<vmem>>, vector<8x128xf32>
    %c0_1 = arith.constant 0 : index
    %c0_2 = arith.constant 0 : index
    %1 = vector.load %arg2[%c0_1, %c0_2] : memref<128x64xf32, #tpu.memory_space<vmem>>, vector<128x64xf32>
    %cst = arith.constant dense<0.000000e+00> : vector<8x64xf32>
    %2 = tpu.matmul %0, %1, %cst {dimension_numbers = #tpu.dot_dimension_numbers<[1], [0], [0], [1], [0, 0, 1, 1], [], []>} : vector<8x128xf32>, vector<128x64xf32>, vector<8x64xf32> -> vector<8x64xf32>
    %c0_3 = arith.constant 0 : index
    %c0_4 = arith.constant 0 : index
    %3 = vector.load %arg3[%c0_3, %c0_4] : memref<1x64xf32, #tpu.memory_space<vmem>>, vector<1x64xf32>
    %4 = vector.broadcast %3 : vector<1x64xf32> to vector<8x64xf32>
    %5 = arith.addf %2, %4 : vector<8x64xf32>
    %6 = math.tanh %5 : vector<8x64xf32>
    %c0_5 = arith.constant 0 : index
    %c0_6 = arith.constant 0 : index
    %7 = vector.load %arg4[%c0_5, %c0_6] : memref<64x128xf32, #tpu.memory_space<vmem>>, vector<64x128xf32>
    %cst_7 = arith.constant dense<0.000000e+00> : vector<8x128xf32>
    %8 = tpu.matmul %6, %7, %cst_7 {dimension_numbers = #tpu.dot_dimension_numbers<[1], [0], [0], [1], [0, 0, 1, 1], [], []>} : vector<8x64xf32>, vector<64x128xf32>, vector<8x128xf32> -> vector<8x128xf32>
    %9 = vector.extract_strided_slice %8 {offsets = [0, 0], sizes = [8, 1], strides = [1, 1]} : vector<8x128xf32> to vector<8x1xf32>
    %10 = vector.extract_strided_slice %8 {offsets = [0, 64], sizes = [8, 1], strides = [1, 1]} : vector<8x128xf32> to vector<8x1xf32>
    %11 = arith.negf %9 : vector<8x1xf32>
    %12 = math.exp %11 : vector<8x1xf32>
    %cst_8 = arith.constant 1.000000e+00 : f32
    %13 = vector.broadcast %cst_8 : f32 to vector<8x1xf32>
    %14 = arith.addf %13, %12 : vector<8x1xf32>
    %15 = arith.divf %13, %14 : vector<8x1xf32>
    %16 = arith.negf %10 : vector<8x1xf32>
    %17 = math.exp %16 : vector<8x1xf32>
    %cst_9 = arith.constant 1.000000e+00 : f32
    %18 = vector.broadcast %cst_9 : f32 to vector<8x1xf32>
    %19 = arith.addf %18, %17 : vector<8x1xf32>
    %20 = arith.divf %18, %19 : vector<8x1xf32>
    %21 = tpu.iota {dimensions = array<i32: 1>} : vector<8x128xi32>
    %c64_i32 = arith.constant 64 : i32
    %22 = vector.broadcast %c64_i32 : i32 to vector<8x128xi32>
    %23 = arith.cmpi slt, %21, %22 : vector<8x128xi32>
    %24 = vector.shape_cast %15 : vector<8x1xf32> to vector<8x1xf32>
    %25 = vector.broadcast %24 : vector<8x1xf32> to vector<8x128xf32>
    %26 = vector.shape_cast %20 : vector<8x1xf32> to vector<8x1xf32>
    %27 = vector.broadcast %26 : vector<8x1xf32> to vector<8x128xf32>
    %28 = arith.select %23, %25, %27 : vector<8x128xi1>, vector<8x128xf32>
    %29 = arith.mulf %0, %28 : vector<8x128xf32>
    %c0_10 = arith.constant 0 : index
    %c0_11 = arith.constant 0 : index
    %30 = vector.load %arg5[%c0_10, %c0_11] : memref<8x128xf32, #tpu.memory_space<vmem>>, vector<8x128xf32>
    tpu.vector_store %arg5[%c0_10, %c0_11], %29 {strides = array<i32>} : memref<8x128xf32, #tpu.memory_space<vmem>>, vector<8x128xf32>,
    %31 = tpu.concatenate %9, %10 in 1 : vector<8x1xf32>, vector<8x1xf32> -> vector<8x2xf32>
    %c0_12 = arith.constant 0 : index
    %c0_13 = arith.constant 0 : index
    %32 = vector.load %arg6[%c0_12, %c0_13] : memref<8x2xf32, #tpu.memory_space<vmem>>, vector<8x2xf32>
    tpu.vector_store %arg6[%c0_12, %c0_13], %31 {strides = array<i32>} : memref<8x2xf32, #tpu.memory_space<vmem>>, vector<8x2xf32>,
    return
  }
  func.func @transform_0(%arg0: i32) -> (i32, i32) {
    %c0_i32 = arith.constant 0 : i32
    %c0_i32_0 = arith.constant 0 : i32
    return %arg0, %c0_i32 : i32, i32
  }
  func.func @transform_1(%arg0: i32) -> (i32, i32) {
    %c0_i32 = arith.constant 0 : i32
    %c0_i32_0 = arith.constant 0 : i32
    %c0_i32_1 = arith.constant 0 : i32
    return %c0_i32, %c0_i32_0 : i32, i32
  }
  func.func @transform_2(%arg0: i32) -> (i32, i32) {
    %c0_i32 = arith.constant 0 : i32
    %c0_i32_0 = arith.constant 0 : i32
    %c0_i32_1 = arith.constant 0 : i32
    return %c0_i32, %c0_i32_0 : i32, i32
  }
  func.func @transform_3(%arg0: i32) -> (i32, i32) {
    %c0_i32 = arith.constant 0 : i32
    %c0_i32_0 = arith.constant 0 : i32
    %c0_i32_1 = arith.constant 0 : i32
    return %c0_i32, %c0_i32_0 : i32, i32
  }
  func.func @transform_4(%arg0: i32) -> (i32, i32) {
    %c0_i32 = arith.constant 0 : i32
    %c0_i32_0 = arith.constant 0 : i32
    return %arg0, %c0_i32 : i32, i32
  }
  func.func @transform_5(%arg0: i32) -> (i32, i32) {
    %c0_i32 = arith.constant 0 : i32
    %c0_i32_0 = arith.constant 0 : i32
    return %arg0, %c0_i32 : i32, i32
  }
}

</mosaic_0001>

<llo_original>
// kernel: tpu_custom_call.1
$region0: #{tpu_custom_call.1}
  #allocation0 [shape = 'u32[]', space=smem, size = 0x4, offset = 0x4, fixed_abs, tag = 'smem constant byte address 0x4 - core index']
  #allocation1 [shape = 'u32[144,128]{1,0:T(1,128)}', space=vmem, size = 0x12000, scoped, tag = 'internal scratch']
  %s0 = inlined_call_operand.vmem [shape: f32[8,128], index: 0, kind: input, shape index: {}]
  %s1 = inlined_call_operand.vmem [shape: f32[128,64], index: 1, kind: input, shape index: {}]
  %s2 = inlined_call_operand.vmem [shape: f32[1,64], index: 2, kind: input, shape index: {}]
  %s3 = inlined_call_operand.vmem [shape: f32[64,128], index: 3, kind: input, shape index: {}]
  %s4 = inlined_call_operand.hbm [shape: f32[8,128], index: 4, kind: output, shape index: {0}]
  %s5 = inlined_call_operand.vmem [shape: f32[8,2], index: 5, kind: output, shape index: {1}]
  %6 = xla_tuple %s4, %s5
  %s7 = sld [smem:[#allocation0]]
  $region34: #{tpu_custom_call.1} parent=0
    _
  %s9 = ssub.s32 1, %s7
  %s10 = scalar_select 0, %s9, %s7
  $region1: #{tpu_custom_call.1} parent=0
    #allocation2 [shape = 'u8[4096]{0}', space=vmem, size = 0x1000, scoped, tag = 'output window, operand 0, single buffered']
    #allocation3 [shape = 's32[1]{0}', space=sflag, size = 0x4, scoped, tag = 'scoped memory for tpu_custom_call.1']
    %11 = vsyncpa [#allocation3], 0
    // Predicated region
    $region2: #{tpu_custom_call.1} parent=1 // pred_check
      _
    $region3: #{tpu_custom_call.1} parent=1 // pred_check_branch
      %13 = sbr.rel (0) target = $region5
    $region4: #{tpu_custom_call.1} parent=1 // pred_region
      _
    $region5: #{tpu_custom_call.1} parent=1 // pred_fallthru
      _
    // Predicated region
    $region6: #{tpu_custom_call.1} parent=1 // pred_check
      _
    $region7: #{tpu_custom_call.1} parent=1 // pred_check_branch
      %15 = sbr.rel (0) target = $region9
    $region8: #{tpu_custom_call.1} parent=1 // pred_region
      _
    $region9: #{tpu_custom_call.1} parent=1 // pred_fallthru
      _
    // Predicated region
    $region10: #{tpu_custom_call.1} parent=1 // pred_check
      _
    $region11: #{tpu_custom_call.1} parent=1 // pred_check_branch
      %17 = sbr.rel (0) target = $region13
    $region12: #{tpu_custom_call.1} parent=1 // pred_region
      _
    $region13: #{tpu_custom_call.1} parent=1 // pred_fallthru
      _
    // Predicated region
    $region14: #{tpu_custom_call.1} parent=1 // pred_check
      _
    $region15: #{tpu_custom_call.1} parent=1 // pred_check_branch
      %19 = sbr.rel (0) target = $region17
    $region16: #{tpu_custom_call.1} parent=1 // pred_region
      _
    $region17: #{tpu_custom_call.1} parent=1 // pred_fallthru
      _
    %v20 = vld [vmem:[%s0] sm:$0xff]
    %v21 = vld [vmem:[%s1] sm:$0xff]
    %v22 = vld [vmem:[%s1 + $0x8] sm:$0xff]
    %v23 = vld [vmem:[%s1 + $0x10] sm:$0xff]
    %v24 = vld [vmem:[%s1 + $0x18] sm:$0xff]
    %v25 = vld [vmem:[%s1 + $0x20] sm:$0xff]
    %v26 = vld [vmem:[%s1 + $0x28] sm:$0xff]
    %v27 = vld [vmem:[%s1 + $0x30] sm:$0xff]
    %v28 = vld [vmem:[%s1 + $0x38] sm:$0xff]
    %v29 = vld [vmem:[%s1 + $0x40] sm:$0xff]
    %v30 = vld [vmem:[%s1 + $0x48] sm:$0xff]
    %v31 = vld [vmem:[%s1 + $0x50] sm:$0xff]
    %v32 = vld [vmem:[%s1 + $0x58] sm:$0xff]
    %v33 = vld [vmem:[%s1 + $0x60] sm:$0xff]
    %v34 = vld [vmem:[%s1 + $0x68] sm:$0xff]
    %v35 = vld [vmem:[%s1 + $0x70] sm:$0xff]
    %v36 = vld [vmem:[%s1 + $0x78] sm:$0xff]
    %v37 = vld [vmem:[%s2] sm:$0x1]
    %v39 = vlaneseq
    %v40 = vshrl.u32 %v39, 7
    %v41 = vsub.s32 0, %v40
    %v42 = vrot.slane %v37, %v41
    %44 = vmatprep.subr.mxu0 0.0
    %45 = vmatpush1.msra.mxu0 %v36
    %46 = vmatprep.subr.mxu0 0.0
    %47 = vmatpush1.msra.mxu0 %v35
    %48 = vmatprep.subr.mxu0 0.0
    %49 = vmatpush1.msra.mxu0 %v34
    %50 = vmatprep.subr.mxu0 0.0
    %51 = vmatpush1.msra.mxu0 %v33
    %52 = vmatprep.subr.mxu0 0.0
    %53 = vmatpush1.msra.mxu0 %v32
    %54 = vmatprep.subr.mxu0 0.0
    %55 = vmatpush1.msra.mxu0 %v31
    %56 = vmatprep.subr.mxu0 0.0
    %57 = vmatpush1.msra.mxu0 %v30
    %58 = vmatprep.subr.mxu0 0.0
    %59 = vmatpush1.msra.mxu0 %v29
    %60 = vmatprep.subr.mxu0 0.0
    %61 = vmatpush1.msra.mxu0 %v28
    %62 = vmatprep.subr.mxu0 0.0
    %63 = vmatpush1.msra.mxu0 %v27
    %64 = vmatprep.subr.mxu0 0.0
    %65 = vmatpush1.msra.mxu0 %v26
    %66 = vmatprep.subr.mxu0 0.0
    %67 = vmatpush1.msra.mxu0 %v25
    %68 = vmatprep.subr.mxu0 0.0
    %69 = vmatpush1.msra.mxu0 %v24
    %70 = vmatprep.subr.mxu0 0.0
    %71 = vmatpush1.msra.mxu0 %v23
    %72 = vmatprep.subr.mxu0 0.0
    %73 = vmatpush1.msra.mxu0 %v22
    %74 = vmatprep.subr.mxu0 0.0
    %75 = vmatpush1.msra.mxu0 %v21
    %76 = vmatprep.subr.mxu0 0.0
    %77 = vmatpush2.msra.mxu0 0.0
    %78 = vmatprep.subr.mxu0 0.0
    %79 = vmatpush2.msra.mxu0 0.0
    %80 = vmatprep.subr.mxu0 0.0
    %81 = vmatpush2.msra.mxu0 0.0
    %82 = vmatprep.subr.mxu0 0.0
    %83 = vmatpush2.msra.mxu0 0.0
    %84 = vmatprep.subr.mxu0 0.0
    %85 = vmatpush2.msra.mxu0 0.0
    %86 = vmatprep.subr.mxu0 0.0
    %87 = vmatpush2.msra.mxu0 0.0
    %88 = vmatprep.subr.mxu0 0.0
    %89 = vmatpush2.msra.mxu0 0.0
    %90 = vmatprep.subr.mxu0 0.0
    %91 = vmatpush2.msra.mxu0 0.0
    %92 = vmatprep.subr.mxu0 0.0
    %93 = vmatpush2.msra.mxu0 0.0
    %94 = vmatprep.subr.mxu0 0.0
    %95 = vmatpush2.msra.mxu0 0.0
    %96 = vmatprep.subr.mxu0 0.0
    %97 = vmatpush2.msra.mxu0 0.0
    %98 = vmatprep.subr.mxu0 0.0
    %99 = vmatpush2.msra.mxu0 0.0
    %100 = vmatprep.subr.mxu0 0.0
    %101 = vmatpush2.msra.mxu0 0.0
    %102 = vmatprep.subr.mxu0 0.0
    %103 = vmatpush2.msra.mxu0 0.0
    %104 = vmatprep.subr.mxu0 0.0
    %105 = vmatpush2.msra.mxu0 0.0
    %106 = vmatprep.subr.mxu0 0.0
    %107 = vmatpush2.msra.mxu0 0.0
    %108 = vmatprep.mubr.f32.mxu0 0.0
    %109 = vmatmul.mubr.f32.gmra.mxu0 %v20
    %v110 = vpop.f32.mrf.mxu0
    %v111 = vadd.f32 %v42, %v110
    %v112 = vpop.f32.mrf.mxu0
    %113 = vdwg.mxu0
    %v114 = vtanh.pop %v111
    %v115 = vld [vmem:[%s3] sm:$0xff]
    %v116 = vld [vmem:[%s3 + $0x8] sm:$0xff]
    %v117 = vld [vmem:[%s3 + $0x10] sm:$0xff]
    %v118 = vld [vmem:[%s3 + $0x18] sm:$0xff]
    %v119 = vld [vmem:[%s3 + $0x20] sm:$0xff]
    %v120 = vld [vmem:[%s3 + $0x28] sm:$0xff]
    %v121 = vld [vmem:[%s3 + $0x30] sm:$0xff]
    %v122 = vld [vmem:[%s3 + $0x38] sm:$0xff]
    %vm123 = vcmask 523264
    %v125 = vsel %vm123, %v114, 0
    %127 = vmatprep.subr.mxu0 0.0
    %128 = vmatpush1.msra.mxu0 0.0
    %129 = vmatprep.subr.mxu0 0.0
    %130 = vmatpush1.msra.mxu0 0.0
    %131 = vmatprep.subr.mxu0 0.0
    %132 = vmatpush1.msra.mxu0 0.0
    %133 = vmatprep.subr.mxu0 0.0
    %134 = vmatpush1.msra.mxu0 0.0
    %135 = vmatprep.subr.mxu0 0.0
    %136 = vmatpush1.msra.mxu0 0.0
    %137 = vmatprep.subr.mxu0 0.0
    %138 = vmatpush1.msra.mxu0 0.0
    %139 = vmatprep.subr.mxu0 0.0
    %140 = vmatpush1.msra.mxu0 0.0
    %141 = vmatprep.subr.mxu0 0.0
    %142 = vmatpush1.msra.mxu0 0.0
    %143 = vmatprep.subr.mxu0 0.0
    %144 = vmatpush1.msra.mxu0 %v122
    %145 = vmatprep.subr.mxu0 0.0
    %146 = vmatpush1.msra.mxu0 %v121
    %147 = vmatprep.subr.mxu0 0.0
    %148 = vmatpush1.msra.mxu0 %v120
    %149 = vmatprep.subr.mxu0 0.0
    %150 = vmatpush1.msra.mxu0 %v119
    %151 = vmatprep.subr.mxu0 0.0
    %152 = vmatpush1.msra.mxu0 %v118
    %153 = vmatprep.subr.mxu0 0.0
    %154 = vmatpush1.msra.mxu0 %v117
    %155 = vmatprep.subr.mxu0 0.0
    %156 = vmatpush1.msra.mxu0 %v116
    %157 = vmatprep.subr.mxu0 0.0
    %158 = vmatpush1.msra.mxu0 %v115
    %159 = vmatprep.subr.mxu0 0.0
    %160 = vmatpush2.msra.mxu0 0.0
    %161 = vmatprep.subr.mxu0 0.0
    %162 = vmatpush2.msra.mxu0 0.0
    %163 = vmatprep.subr.mxu0 0.0
    %164 = vmatpush2.msra.mxu0 0.0
    %165 = vmatprep.subr.mxu0 0.0
    %166 = vmatpush2.msra.mxu0 0.0
    %167 = vmatprep.subr.mxu0 0.0
    %168 = vmatpush2.msra.mxu0 0.0
    %169 = vmatprep.subr.mxu0 0.0
    %170 = vmatpush2.msra.mxu0 0.0
    %171 = vmatprep.subr.mxu0 0.0
    %172 = vmatpush2.msra.mxu0 0.0
    %173 = vmatprep.subr.mxu0 0.0
    %174 = vmatpush2.msra.mxu0 0.0
    %175 = vmatprep.subr.mxu0 0.0
    %176 = vmatpush2.msra.mxu0 0.0
    %177 = vmatprep.subr.mxu0 0.0
    %178 = vmatpush2.msra.mxu0 0.0
    %179 = vmatprep.subr.mxu0 0.0
    %180 = vmatpush2.msra.mxu0 0.0
    %181 = vmatprep.subr.mxu0 0.0
    %182 = vmatpush2.msra.mxu0 0.0
    %183 = vmatprep.subr.mxu0 0.0
    %184 = vmatpush2.msra.mxu0 0.0
    %185 = vmatprep.subr.mxu0 0.0
    %186 = vmatpush2.msra.mxu0 0.0
    %187 = vmatprep.subr.mxu0 0.0
    %188 = vmatpush2.msra.mxu0 0.0
    %189 = vmatprep.subr.mxu0 0.0
    %190 = vmatpush2.msra.mxu0 0.0
    %191 = vmatprep.mubr.f32.mxu0 0.0
    %192 = vmatmul.mubr.f32.gmra.mxu0 %v125
    %v193 = vpop.f32.mrf.mxu0
    %v194 = vadd.f32 0.0, %v193
    %v195 = vpop.f32.mrf.mxu0
    %196 = vdwg.mxu0
    %v197 = vxor.u32 %v194, 2147483648
    %v198 = vmul.f32 %v197, 1.442695
    %v199 = vpow.pop %v198
    %v200 = vadd.f32 %v199, 1.0
    %v201 = vrcp.pop %v200
    %v202 = vmul.f32 1.0, %v201
    %v203 = vlaneseq
    %v204 = vand.u32 %v203, 127
    %vm205 = vcmp.lt.s32.totalorder %v204, 64
    %207 = vset.pattern.permute.xlu0 0
    %208 = vperm.xlu0 %207, %v202
    %v209 = vpop.permute.xlu0 %208
    %211 = vset.pattern.permute.xlu0 64
    %212 = vperm.xlu0 %211, %v202
    %v213 = vpop.permute.xlu0 %212
    %v215 = vsel %vm205, %v209, %v213
    %v216 = vmul.f32 %v20, %v215
    %217 = vst [vmem:[#allocation2] sm:$0xff] %v216
    %219 = vrot.lane.b32.xlu0 %v194, 65
    %v220 = vpop.permute.xlu0 %219
    %vm222 = vcmask 7168
    %v223 = vsel %vm222, %v194, %v220
    %vm224 = vcmask 15360
    %225 = vst.msk [vmem:[%s5] sm:$0xff] %vm224, %v223
    // Predicated region
    $region18: #{tpu_custom_call.1} parent=1 // pred_check
      _
    $region19: #{tpu_custom_call.1} parent=1 // pred_check_branch
      %227 = sbr.rel (0) target = $region21
    $region20: #{tpu_custom_call.1} parent=1 // pred_region
      %s229 = ssub.s32 128, 128
      %230 = vsyncadd [#allocation3], %s229
      %s232 = sshll.u32 [#allocation2], 4
      %s233 = int_to_ptr.vmem [resolvable:$true] %s232
      %235 = dma.vmem_to_hbm [thread:$0]  %s233, 128, %s4, [#allocation3]
    $region21: #{tpu_custom_call.1} parent=1 // pred_fallthru
      _
    // Predicated region
    $region22: #{tpu_custom_call.1} parent=1 // pred_check
      _
    $region23: #{tpu_custom_call.1} parent=1 // pred_check_branch
      %237 = sbr.rel (0) target = $region25
    $region24: #{tpu_custom_call.1} parent=1 // pred_region
      _
    $region25: #{tpu_custom_call.1} parent=1 // pred_fallthru
      _
    // Predicated region
    $region26: #{tpu_custom_call.1} parent=1 // pred_check
      _
    $region27: #{tpu_custom_call.1} parent=1 // pred_check_branch
      %239 = sbr.rel (0) target = $region29
    $region28: #{tpu_custom_call.1} parent=1 // pred_region
      %240 = dma.done [#allocation3], 128
    $region29: #{tpu_custom_call.1} parent=1 // pred_fallthru
      _
    // Predicated region
    $region30: #{tpu_custom_call.1} parent=1 // pred_check
      _
    $region31: #{tpu_custom_call.1} parent=1 // pred_check_branch
      %242 = sbr.rel (0) target = $region33
    $region32: #{tpu_custom_call.1} parent=1 // pred_region
      _
    $region33: #{tpu_custom_call.1} parent=1 // pred_fallthru
      _
    %243 = vsyncpa [#allocation3], 1

</llo_original>
